<compile_context>
chip_gen: v7x
topology: tpu7x:2x2x1
jax: 0.10.0
libtpu: 0.0.40
codegen_flags: <defaults>
</compile_context>

<pallas_src>
import functools

import numpy as np
import jax
import jax.numpy as jnp
from jax import lax
from jax.experimental import pallas as pl
from jax.experimental.pallas import tpu as pltpu


def _split_lp_kernel(scalar_ref, feat_ref, pred_ref, anchors_ref,
                     g_scr, a_scr, x_scr, f_scr, r_scr, rx_scr, *,
                     alpha, eps, split_num, block):
    """One padded cluster of NP rows (nv of them valid), D-dim features.

    scalar_ref : (2,)  i32 SMEM  -- [q_local, n_valid]
    feat_ref   : (NP, D) f32     -- zero-padded cluster features
    pred_ref   : (NP, 1) i32     -- per-point argmax assignment
    anchors_ref: (1, K)  i32     -- local indices of the K selected anchors
    g/a/x/f/r/rx_scr : VMEM scratch (Gram, system matrix, RHS/solution,
                       deferred multipliers, pivot rows, pivot RHS rows)
    """
    NP, D = feat_ref.shape
    K = split_num
    b = block
    num_panels = NP // b

    q = scalar_ref[0]          # local row of the query point (features[idx])
    nv = scalar_ref[1]         # number of valid (non-padded) rows

    feat = feat_ref[...].astype(jnp.float32)

    row_n = lax.broadcasted_iota(jnp.int32, (NP, 1), 0)   # (NP, 1)
    col_n = lax.broadcasted_iota(jnp.int32, (1, NP), 1)   # (1, NP)
    col_k = lax.broadcasted_iota(jnp.int32, (1, K), 1)    # (1, K)

    # ---- Gram matrix, computed once on the MXU ----------------------------
    dn = (((1,), (1,)), ((), ()))   # contract feature dims of both operands
    g_scr[...] = lax.dot_general(feat, feat, dn,
                                 preferred_element_type=jnp.float32)  # (NP, NP)

    valid_col = col_n < nv

    def argmin_idx(sim):  # first-occurrence argmin of a (1, NP) row
        mn = jnp.min(sim)
        return jnp.min(jnp.where(sim == mn, col_n, NP)).astype(jnp.int32)

    # ---- farthest-anchor selection (running max of similarities) ----------
    sim0 = jnp.where(valid_col, g_scr[pl.ds(q, 1), :], jnp.inf)   # (1, NP)
    a0 = argmin_idx(sim0)
    anchors0 = jnp.where(col_k == 0, a0, 0).astype(jnp.int32)

    def anchor_body(sp, carry):
        sim, a_prev, anchors = carry
        # row a_prev of G == sim of that anchor to every point (Gram reuse).
        g_row = jnp.sum(jnp.where(row_n == a_prev, g_scr[...], 0.0),
                        axis=0, keepdims=True)                    # (1, NP)
        sim2 = jnp.maximum(sim, g_row)        # padded cols stay +inf
        a = argmin_idx(sim2)
        anchors = jnp.where(col_k == sp, a, anchors)
        return sim2, a, anchors

    _, _, anchors = lax.fori_loop(1, K, anchor_body, (sim0, a0, anchors0))
    anchors_ref[...] = anchors

    # ---- Y (one-hot at the anchors) becomes the initial RHS/solution ------
    x_scr[...] = (row_n == anchors).astype(jnp.float32)            # (NP, K)

    # ---- graph + normalized affinity; A written straight into its scratch -
    g = g_scr[...]
    row2 = lax.broadcasted_iota(jnp.int32, (NP, NP), 0)
    col2 = lax.broadcasted_iota(jnp.int32, (NP, NP), 1)
    eye_b = row2 == col2
    valid2 = (row2 < nv) & (col2 < nv)
    w = jnp.where(valid2 & jnp.logical_not(eye_b), jnp.exp(g), 0.0)
    d1 = lax.rsqrt(jnp.sum(w, axis=1, keepdims=True) + eps)        # (NP, 1)
    d2 = lax.rsqrt(jnp.sum(w, axis=0, keepdims=True) + eps)        # (1, NP)
    eye_f = eye_b.astype(jnp.float32)
    a_mat = eye_f - alpha * (d1 * w * d2) + eps     # eps on every entry, as in torch
    # Padded block is the exact identity so it never couples into the valid solve.
    a_scr[...] = jnp.where(valid2, a_mat, eye_f)

    # ---- blocked Gauss-Jordan solve  A X = Y  (exact, no pivoting) --------
    # Per pivot k: dynamic row slice + fac-trick rank-1 update restricted to the
    # N x b panel (and the panel rows' trailing strip); the bulk trailing update
    # for all other rows is deferred and applied once per panel on the MXU.
    for p in range(num_panels):
        j0 = p * b
        j1 = j0 + b
        wtr = NP - j1                                   # trailing width (static)
        lane_b = lax.broadcasted_iota(jnp.int32, (1, b), 1)

        def pivot_step(k_rel, carry, j0=j0, j1=j1, wtr=wtr, lane_b=lane_b):
            k = j0 + k_rel
            row_a = a_scr[pl.ds(k, 1), pl.ds(j0, NP - j0)]          # (1, NP-j0)
            row_x = x_scr[pl.ds(k, 1), :]                           # (1, K)
            slab = a_scr[:, pl.ds(j0, b)]                           # (NP, b)
            sel = lane_b == k_rel
            pivot = jnp.sum(jnp.where(sel, row_a[:, :b], 0.0))
            inv_p = 1.0 / pivot
            r_a = row_a * inv_p
            r_x = row_x * inv_p
            col = jnp.sum(jnp.where(sel, slab, 0.0), axis=1, keepdims=True)  # (NP,1)
            # fac trick: fac[k] = pivot - 1 so the update also writes row k = r_a
            fac = col - (row_n == k).astype(jnp.float32)
            # panel slab update (all rows)
            a_scr[:, pl.ds(j0, b)] = slab - fac * r_a[:, :b]
            fac_p = fac[j0:j1, :]                                    # (b, 1)
            # panel rows: trailing columns + RHS updated in place
            if wtr > 0:
                strip = a_scr[pl.ds(j0, b), pl.ds(j1, wtr)]
                a_scr[pl.ds(j0, b), pl.ds(j1, wtr)] = strip - fac_p * r_a[:, b:]
            xs = x_scr[pl.ds(j0, b), :]
            x_scr[pl.ds(j0, b), :] = xs - fac_p * r_x
            # record deferred factors for all other rows
            if num_panels > 1:
                f_scr[...] = jnp.where(sel, fac, f_scr[...])
                rx_scr[pl.ds(k_rel, 1), :] = r_x
                if wtr > 0:
                    r_scr[pl.ds(k_rel, 1), pl.ds(j1, wtr)] = r_a[:, b:]
            return carry

        lax.fori_loop(0, b, pivot_step, 0)

        if num_panels > 1:
            # Panel rows were already updated in place -> zero their multipliers.
            f_scr[pl.ds(j0, b), :] = jnp.zeros((b, b), jnp.float32)
            f_z = f_scr[...]
            if wtr > 0:
                tr = a_scr[:, pl.ds(j1, wtr)]
                a_scr[:, pl.ds(j1, wtr)] = tr - jnp.dot(
                    f_z, r_scr[:, pl.ds(j1, wtr)],
                    preferred_element_type=jnp.float32)
            x_scr[...] = x_scr[...] - jnp.dot(
                f_z, rx_scr[...], preferred_element_type=jnp.float32)

    # ---- argmax over the K columns (first occurrence) ----------------------
    x = x_scr[...]
    mx = jnp.max(x, axis=1, keepdims=True)
    pred = jnp.min(jnp.where(x == mx, col_k, K), axis=1,
                   keepdims=True).astype(jnp.int32)
    pred_ref[...] = pred


def _bucket(n):
    """Pad cluster size to a bucket so recompiles are bounded (sublane-aligned)."""
    if n <= 128:
        return max(16, -(-n // 16) * 16)
    return -(-n // 128) * 128


@functools.lru_cache(maxsize=None)
def _build_split_lp_call(NP, D, K, alpha, eps):
    b = NP if NP <= 128 else 128            # GJ panel width (MXU contraction dim)
    assert NP % b == 0 and NP % 8 == 0

    kernel = functools.partial(_split_lp_kernel, alpha=alpha, eps=eps,
                               split_num=K, block=b)

    scratch = [
        pltpu.VMEM((NP, NP), jnp.float32),   # G (Gram)
        pltpu.VMEM((NP, NP), jnp.float32),   # A (system matrix)
        pltpu.VMEM((NP, K), jnp.float32),    # X (RHS -> solution)
        pltpu.VMEM((NP, b), jnp.float32),    # F (deferred multipliers)
        pltpu.VMEM((b, NP), jnp.float32),    # R (normalized pivot rows, trailing)
        pltpu.VMEM((b, K), jnp.float32),     # RX (normalized pivot RHS rows)
    ]
    need = 4 * (2 * NP * NP + NP * K + 2 * NP * b + b * K + 2 * NP * D) + (1 << 20)
    # Explicit budget (v7x has 64 MiB physical / 32 MiB default scoped VMEM).
    vmem_limit = int(min(96 * 2**20, max(32 * 2**20, 2 * need)))

    grid_spec = pltpu.PrefetchScalarGridSpec(
        num_scalar_prefetch=1,
        grid=(1,),
        in_specs=[pl.BlockSpec((NP, D), lambda i, s: (0, 0))],
        out_specs=(pl.BlockSpec((NP, 1), lambda i, s: (0, 0)),
                   pl.BlockSpec((1, K), lambda i, s: (0, 0))),
        scratch_shapes=scratch,
    )
    call = pl.pallas_call(
        kernel,
        grid_spec=grid_spec,
        out_shape=(jax.ShapeDtypeStruct((NP, 1), jnp.int32),
                   jax.ShapeDtypeStruct((1, K), jnp.int32)),
        compiler_params=pltpu.CompilerParams(
            dimension_semantics=("arbitrary",),
            vmem_limit_bytes=vmem_limit),
    )
    return jax.jit(call)


def split_lp_cluster(split_feat, q_local, *, alpha, eps, split_num):
    """Run the Pallas kernel on one cluster (host-side padding to a size bucket)."""
    n, d = split_feat.shape
    np_pad = _bucket(n)
    feat_p = np.zeros((np_pad, d), dtype=np.float32)
    feat_p[:n] = split_feat
    scalars = np.array([q_local, n], dtype=np.int32)
    fn = _build_split_lp_call(np_pad, d, split_num, float(alpha), float(eps))
    pred, anchors = fn(scalars, feat_p)
    pred = np.asarray(jax.block_until_ready(pred))[:n, 0]
    anchors = np.asarray(jax.block_until_ready(anchors))[0]
    return pred, anchors


class SplitLP:
    """JAX/Pallas port of Split_LP (method=1). Only the sub_level branch is kernelized."""

    def __init__(self, alpha, split_num=8):
        self.alpha = float(alpha)
        self.eps = float(np.finfo(float).eps)
        self.method = 1
        self.split_num = split_num

    def forward(self, indexes, features, labels, sub_level=1,
                sub_labels=None, outliers_label=None):
        # TODO(synk): sub_level=0 branch needs host-side set() dedup over sub_labels
        #             (dynamic, data-dependent shapes) -> not kernelized here.
        # TODO(synk): clusters are processed sequentially because label updates feed
        #             back into later clusters (same as torch); same-bucket clusters
        #             could only be batched across a parallel grid axis if disjoint.
        assert self.method == 1 and sub_level, "only method=1 / sub_level branch implemented"
        labels = np.asarray(labels).copy()
        feats = np.asarray(features, dtype=np.float32)

        for idx in indexes:
            split_idxs = np.where(labels == labels[idx])[0]
            if len(split_idxs) <= self.split_num:
                continue
            q_local = int(np.where(split_idxs == idx)[0][0])
            pred, anchors_local = split_lp_cluster(
                feats[split_idxs], q_local,
                alpha=self.alpha, eps=self.eps, split_num=self.split_num)
            anchor_global = split_idxs[anchors_local]      # global ids of anchors
            labels[split_idxs] = anchor_global[pred]       # labels[split_idxs] = lab[pred]
            labels[idx] = idx                              # labels[idx] = idx
        return labels


if __name__ == "__main__":
    key = jax.random.PRNGKey(0)
    feat_dim, split_num = 32, 8
    # Two clusters: 16 points (single-panel solve, NP=16) and 160 points
    # (bucketed to NP=256, exercises the blocked/MXU-deferred solve path).
    cluster_sizes = [16, 160]
    num_extra = 8
    num_samples = sum(cluster_sizes) + num_extra

    feats = jax.random.normal(key, (num_samples, feat_dim), dtype=jnp.float32)
    feats = feats / jnp.linalg.norm(feats, axis=1, keepdims=True)

    labels = np.zeros(num_samples, dtype=np.int64)
    indexes = []
    start = 0
    for c, sz in enumerate(cluster_sizes):
        labels[start:start + sz] = c
        indexes.append(start)          # one query index inside each big cluster
        start += sz
    labels[start:] = np.arange(len(cluster_sizes),
                               len(cluster_sizes) + num_extra)

    module = SplitLP(alpha=0.99, split_num=split_num)
    new_labels = module.forward(indexes, feats, labels, sub_level=1)

    jax.block_until_ready(jnp.asarray(new_labels))
    print("KERNEL_OK")
</pallas_src>

<mosaic_0001>
module attributes {stable_mosaic.version = 11 : i64} {
  func.func @_split_lp_kernel(%arg0: i32, %arg1: memref<2xi32, #tpu.memory_space<smem>>, %arg2: memref<16x32xf32, #tpu.memory_space<vmem>>, %arg3: memref<16x1xi32, #tpu.memory_space<vmem>>, %arg4: memref<1x8xi32, #tpu.memory_space<vmem>>, %arg5: memref<16x16xf32, #tpu.memory_space<vmem>>, %arg6: memref<16x16xf32, #tpu.memory_space<vmem>>, %arg7: memref<16x8xf32, #tpu.memory_space<vmem>>, %arg8: memref<16x16xf32, #tpu.memory_space<vmem>>, %arg9: memref<16x16xf32, #tpu.memory_space<vmem>>, %arg10: memref<16x8xf32, #tpu.memory_space<vmem>>) attributes {dimension_semantics = [#tpu.dimension_semantics<arbitrary>], iteration_bounds = array<i64: 1>, scalar_prefetch = 1 : i64, scratch_operands = 6 : i64, tpu.core_type = #tpu.core_type<tc>, window_params = [{pipeline_mode = #tpu.pipeline_mode<synchronous>, transform_indices = @transform_0, window_bounds = array<i64: 16, 32>}, {pipeline_mode = #tpu.pipeline_mode<synchronous>, transform_indices = @transform_1, window_bounds = array<i64: 16, 1>}, {pipeline_mode = #tpu.pipeline_mode<synchronous>, transform_indices = @transform_2, window_bounds = array<i64: 1, 8>}]} {
    %c0 = arith.constant 0 : index
    %0 = memref.load %arg1[%c0] : memref<2xi32, #tpu.memory_space<smem>>
    %c1 = arith.constant 1 : index
    %1 = memref.load %arg1[%c1] : memref<2xi32, #tpu.memory_space<smem>>
    %c0_0 = arith.constant 0 : index
    %c0_1 = arith.constant 0 : index
    %2 = vector.load %arg2[%c0_0, %c0_1] : memref<16x32xf32, #tpu.memory_space<vmem>>, vector<16x32xf32>
    %3 = tpu.iota {dimensions = array<i32: 0>} : vector<16x1xi32>
    %4 = tpu.iota {dimensions = array<i32: 1>} : vector<1x16xi32>
    %5 = tpu.iota {dimensions = array<i32: 1>} : vector<1x8xi32>
    %cst = arith.constant dense<0.000000e+00> : vector<16x16xf32>
    %6 = tpu.matmul %2, %2, %cst {dimension_numbers = #tpu.dot_dimension_numbers<[1], [1], [0], [0], [0, 0, 1, 0], [], []>} : vector<16x32xf32>, vector<16x32xf32>, vector<16x16xf32> -> vector<16x16xf32>
    %c0_2 = arith.constant 0 : index
    %c0_3 = arith.constant 0 : index
    %7 = vector.load %arg5[%c0_2, %c0_3] : memref<16x16xf32, #tpu.memory_space<vmem>>, vector<16x16xf32>
    tpu.vector_store %arg5[%c0_2, %c0_3], %6 {strides = array<i32>} : memref<16x16xf32, #tpu.memory_space<vmem>>, vector<16x16xf32>,
    %8 = vector.broadcast %1 : i32 to vector<1x16xi32>
    %9 = arith.cmpi slt, %4, %8 : vector<1x16xi32>
    %10 = arith.index_cast %0 : i32 to index
    %c0_4 = arith.constant 0 : index
    %11 = vector.load %arg5[%10, %c0_4] : memref<16x16xf32, #tpu.memory_space<vmem>>, vector<1x16xf32>
    %cst_5 = arith.constant 0x7F800000 : f32
    %12 = vector.broadcast %cst_5 : f32 to vector<1x16xf32>
    %13 = arith.select %9, %11, %12 : vector<1x16xi1>, vector<1x16xf32>
    %14 = vector.shape_cast %13 : vector<1x16xf32> to vector<1x1x16xf32>
    %cst_6 = arith.constant dense<0x7F800000> : vector<1xf32>
    %15 = vector.multi_reduction <minimumf>, %14, %cst_6 [1, 2] : vector<1x1x16xf32> to vector<1xf32>
    %16 = vector.shape_cast %15 : vector<1xf32> to vector<1x1x1xf32>
    %17 = vector.extract %16[0, 0, 0] : f32 from vector<1x1x1xf32>
    %18 = vector.broadcast %17 : f32 to vector<1x16xf32>
    %19 = arith.cmpf oeq, %13, %18 : vector<1x16xf32>
    %c16_i32 = arith.constant 16 : i32
    %20 = vector.broadcast %c16_i32 : i32 to vector<1x16xi32>
    %21 = arith.select %19, %4, %20 : vector<1x16xi1>, vector<1x16xi32>
    %22 = vector.shape_cast %21 : vector<1x16xi32> to vector<1x1x16xi32>
    %cst_7 = arith.constant dense<2147483647> : vector<1xi32>
    %23 = vector.multi_reduction <minsi>, %22, %cst_7 [1, 2] : vector<1x1x16xi32> to vector<1xi32>
    %24 = vector.shape_cast %23 : vector<1xi32> to vector<1x1x1xi32>
    %25 = vector.extract %24[0, 0, 0] : i32 from vector<1x1x1xi32>
    %c0_i32 = arith.constant 0 : i32
    %26 = vector.broadcast %c0_i32 : i32 to vector<1x8xi32>
    %27 = arith.cmpi eq, %5, %26 : vector<1x8xi32>
    %c0_i32_8 = arith.constant 0 : i32
    %28 = vector.broadcast %25 : i32 to vector<1x8xi32>
    %29 = vector.broadcast %c0_i32_8 : i32 to vector<1x8xi32>
    %30 = arith.select %27, %28, %29 : vector<1x8xi1>, vector<1x8xi32>
    %c1_i32 = arith.constant 1 : i32
    %c7_i32 = arith.constant 7 : i32
    %31 = arith.addi %c1_i32, %c7_i32 : i32
    %c1_i32_9 = arith.constant 1 : i32
    %32:3 = scf.for %arg11 = %c1_i32 to %31 step %c1_i32_9 iter_args(%arg12 = %13, %arg13 = %25, %arg14 = %30) -> (vector<1x16xf32>, i32, vector<1x8xi32>)  : i32 {
      %91 = vector.broadcast %arg13 : i32 to vector<16x1xi32>
      %92 = arith.cmpi eq, %3, %91 : vector<16x1xi32>
      %c0_37 = arith.constant 0 : index
      %c0_38 = arith.constant 0 : index
      %93 = vector.load %arg5[%c0_37, %c0_38] : memref<16x16xf32, #tpu.memory_space<vmem>>, vector<16x16xf32>
      %cst_39 = arith.constant 0.000000e+00 : f32
      %94 = vector.shape_cast %92 : vector<16x1xi1> to vector<16x1xi1>
      %95 = vector.broadcast %94 : vector<16x1xi1> to vector<16x16xi1>
      %96 = vector.broadcast %cst_39 : f32 to vector<16x16xf32>
      %97 = arith.select %95, %93, %96 : vector<16x16xi1>, vector<16x16xf32>
      %cst_40 = arith.constant dense<0.000000e+00> : vector<16xf32>
      %98 = vector.multi_reduction <add>, %97, %cst_40 [0] : vector<16x16xf32> to vector<16xf32>
      %99 = vector.shape_cast %98 : vector<16xf32> to vector<1x16xf32>
      %100 = arith.maximumf %arg12, %99 : vector<1x16xf32>
      %101 = vector.shape_cast %100 : vector<1x16xf32> to vector<1x1x16xf32>
      %cst_41 = arith.constant dense<0x7F800000> : vector<1xf32>
      %102 = vector.multi_reduction <minimumf>, %101, %cst_41 [1, 2] : vector<1x1x16xf32> to vector<1xf32>
      %103 = vector.shape_cast %102 : vector<1xf32> to vector<1x1x1xf32>
      %104 = vector.extract %103[0, 0, 0] : f32 from vector<1x1x1xf32>
      %105 = vector.broadcast %104 : f32 to vector<1x16xf32>
      %106 = arith.cmpf oeq, %100, %105 : vector<1x16xf32>
      %c16_i32_42 = arith.constant 16 : i32
      %107 = vector.broadcast %c16_i32_42 : i32 to vector<1x16xi32>
      %108 = arith.select %106, %4, %107 : vector<1x16xi1>, vector<1x16xi32>
      %109 = vector.shape_cast %108 : vector<1x16xi32> to vector<1x1x16xi32>
      %cst_43 = arith.constant dense<2147483647> : vector<1xi32>
      %110 = vector.multi_reduction <minsi>, %109, %cst_43 [1, 2] : vector<1x1x16xi32> to vector<1xi32>
      %111 = vector.shape_cast %110 : vector<1xi32> to vector<1x1x1xi32>
      %112 = vector.extract %111[0, 0, 0] : i32 from vector<1x1x1xi32>
      %113 = vector.broadcast %arg11 : i32 to vector<1x8xi32>
      %114 = arith.cmpi eq, %5, %113 : vector<1x8xi32>
      %115 = vector.broadcast %112 : i32 to vector<1x8xi32>
      %116 = arith.select %114, %115, %arg14 : vector<1x8xi1>, vector<1x8xi32>
      scf.yield %100, %112, %116 : vector<1x16xf32>, i32, vector<1x8xi32>
    }
    %c7_i32_10 = arith.constant 7 : i32
    %c0_11 = arith.constant 0 : index
    %c0_12 = arith.constant 0 : index
    %33 = vector.load %arg4[%c0_11, %c0_12] : memref<1x8xi32, #tpu.memory_space<vmem>>, vector<1x8xi32>
    tpu.vector_store %arg4[%c0_11, %c0_12], %32#2 {strides = array<i32>} : memref<1x8xi32, #tpu.memory_space<vmem>>, vector<1x8xi32>,
    %34 = vector.broadcast %3 : vector<16x1xi32> to vector<16x8xi32>
    %35 = vector.broadcast %32#2 : vector<1x8xi32> to vector<16x8xi32>
    %36 = arith.cmpi eq, %34, %35 : vector<16x8xi32>
    %37 = arith.extui %36 : vector<16x8xi1> to vector<16x8xi32>
    %38 = arith.sitofp %37 : vector<16x8xi32> to vector<16x8xf32>
    %c0_13 = arith.constant 0 : index
    %c0_14 = arith.constant 0 : index
    %39 = vector.load %arg7[%c0_13, %c0_14] : memref<16x8xf32, #tpu.memory_space<vmem>>, vector<16x8xf32>
    tpu.vector_store %arg7[%c0_13, %c0_14], %38 {strides = array<i32>} : memref<16x8xf32, #tpu.memory_space<vmem>>, vector<16x8xf32>,
    %c0_15 = arith.constant 0 : index
    %c0_16 = arith.constant 0 : index
    %40 = vector.load %arg5[%c0_15, %c0_16] : memref<16x16xf32, #tpu.memory_space<vmem>>, vector<16x16xf32>
    %41 = tpu.iota {dimensions = array<i32: 0>} : vector<16x16xi32>
    %42 = tpu.iota {dimensions = array<i32: 1>} : vector<16x16xi32>
    %43 = arith.cmpi eq, %41, %42 : vector<16x16xi32>
    %44 = vector.broadcast %1 : i32 to vector<16x16xi32>
    %45 = arith.cmpi slt, %41, %44 : vector<16x16xi32>
    %46 = vector.broadcast %1 : i32 to vector<16x16xi32>
    %47 = arith.cmpi slt, %42, %46 : vector<16x16xi32>
    %48 = arith.andi %45, %47 : vector<16x16xi1>
    %cst_17 = arith.constant dense<true> : vector<16x16xi1>
    %49 = arith.xori %43, %cst_17 : vector<16x16xi1>
    %50 = arith.andi %48, %49 : vector<16x16xi1>
    %51 = math.exp %40 : vector<16x16xf32>
    %cst_18 = arith.constant 0.000000e+00 : f32
    %52 = vector.broadcast %cst_18 : f32 to vector<16x16xf32>
    %53 = arith.select %50, %51, %52 : vector<16x16xi1>, vector<16x16xf32>
    %cst_19 = arith.constant dense<0.000000e+00> : vector<16xf32>
    %54 = vector.multi_reduction <add>, %53, %cst_19 [1] : vector<16x16xf32> to vector<16xf32>
    %55 = vector.shape_cast %54 : vector<16xf32> to vector<16x1xf32>
    %cst_20 = arith.constant 2.22044605E-16 : f32
    %56 = vector.broadcast %cst_20 : f32 to vector<16x1xf32>
    %57 = arith.addf %55, %56 : vector<16x1xf32>
    %58 = math.rsqrt %57 : vector<16x1xf32>
    %cst_21 = arith.constant dense<0.000000e+00> : vector<16xf32>
    %59 = vector.multi_reduction <add>, %53, %cst_21 [0] : vector<16x16xf32> to vector<16xf32>
    %60 = vector.shape_cast %59 : vector<16xf32> to vector<1x16xf32>
    %cst_22 = arith.constant 2.22044605E-16 : f32
    %61 = vector.broadcast %cst_22 : f32 to vector<1x16xf32>
    %62 = arith.addf %60, %61 : vector<1x16xf32>
    %63 = math.rsqrt %62 : vector<1x16xf32>
    %64 = arith.extui %43 : vector<16x16xi1> to vector<16x16xi32>
    %65 = arith.sitofp %64 : vector<16x16xi32> to vector<16x16xf32>
    %66 = vector.broadcast %58 : vector<16x1xf32> to vector<16x16xf32>
    %67 = arith.mulf %66, %53 : vector<16x16xf32>
    %68 = vector.broadcast %63 : vector<1x16xf32> to vector<16x16xf32>
    %69 = arith.mulf %67, %68 : vector<16x16xf32>
    %cst_23 = arith.constant 9.900000e-01 : f32
    %70 = vector.broadcast %cst_23 : f32 to vector<16x16xf32>
    %71 = arith.mulf %70, %69 : vector<16x16xf32>
    %72 = arith.subf %65, %71 : vector<16x16xf32>
    %cst_24 = arith.constant 2.22044605E-16 : f32
    %73 = vector.broadcast %cst_24 : f32 to vector<16x16xf32>
    %74 = arith.addf %72, %73 : vector<16x16xf32>
    %75 = arith.select %48, %74, %65 : vector<16x16xi1>, vector<16x16xf32>
    %c0_25 = arith.constant 0 : index
    %c0_26 = arith.constant 0 : index
    %76 = vector.load %arg6[%c0_25, %c0_26] : memref<16x16xf32, #tpu.memory_space<vmem>>, vector<16x16xf32>
    tpu.vector_store %arg6[%c0_25, %c0_26], %75 {strides = array<i32>} : memref<16x16xf32, #tpu.memory_space<vmem>>, vector<16x16xf32>,
    %77 = tpu.iota {dimensions = array<i32: 1>} : vector<1x16xi32>
    %c0_i32_27 = arith.constant 0 : i32
    %c16_i32_28 = arith.constant 16 : i32
    %78 = arith.addi %c0_i32_27, %c16_i32_28 : i32
    %c1_i32_29 = arith.constant 1 : i32
    scf.for %arg11 = %c0_i32_27 to %78 step %c1_i32_29  : i32 {
      %c0_i32_37 = arith.constant 0 : i32
      %91 = arith.addi %c0_i32_37, %arg11 : i32
      %92 = arith.index_cast %91 : i32 to index
      %c0_38 = arith.constant 0 : index
      %93 = vector.load %arg6[%92, %c0_38] : memref<16x16xf32, #tpu.memory_space<vmem>>, vector<1x16xf32>
      %94 = arith.index_cast %91 : i32 to index
      %c0_39 = arith.constant 0 : index
      %95 = vector.load %arg7[%94, %c0_39] : memref<16x8xf32, #tpu.memory_space<vmem>>, vector<1x8xf32>
      %c0_40 = arith.constant 0 : index
      %c0_41 = arith.constant 0 : index
      %96 = vector.load %arg6[%c0_40, %c0_41] : memref<16x16xf32, #tpu.memory_space<vmem>>, vector<16x16xf32>
      %97 = vector.broadcast %arg11 : i32 to vector<1x16xi32>
      %98 = arith.cmpi eq, %77, %97 : vector<1x16xi32>
      %cst_42 = arith.constant 0.000000e+00 : f32
      %99 = vector.broadcast %cst_42 : f32 to vector<1x16xf32>
      %100 = arith.select %98, %93, %99 : vector<1x16xi1>, vector<1x16xf32>
      %101 = vector.shape_cast %100 : vector<1x16xf32> to vector<1x1x16xf32>
      %cst_43 = arith.constant dense<0.000000e+00> : vector<1xf32>
      %102 = vector.multi_reduction <add>, %101, %cst_43 [1, 2] : vector<1x1x16xf32> to vector<1xf32>
      %103 = vector.shape_cast %102 : vector<1xf32> to vector<1x1x1xf32>
      %104 = vector.extract %103[0, 0, 0] : f32 from vector<1x1x1xf32>
      %cst_44 = arith.constant 1.000000e+00 : f32
      %105 = arith.divf %cst_44, %104 : f32
      %106 = vector.broadcast %105 : f32 to vector<1x16xf32>
      %107 = arith.mulf %93, %106 : vector<1x16xf32>
      %108 = vector.broadcast %105 : f32 to vector<1x8xf32>
      %109 = arith.mulf %95, %108 : vector<1x8xf32>
      %cst_45 = arith.constant 0.000000e+00 : f32
      %110 = vector.shape_cast %98 : vector<1x16xi1> to vector<1x16xi1>
      %111 = vector.broadcast %110 : vector<1x16xi1> to vector<16x16xi1>
      %112 = vector.broadcast %cst_45 : f32 to vector<16x16xf32>
      %113 = arith.select %111, %96, %112 : vector<16x16xi1>, vector<16x16xf32>
      %cst_46 = arith.constant dense<0.000000e+00> : vector<16xf32>
      %114 = vector.multi_reduction <add>, %113, %cst_46 [1] : vector<16x16xf32> to vector<16xf32>
      %115 = vector.shape_cast %114 : vector<16xf32> to vector<16x1xf32>
      %116 = vector.broadcast %91 : i32 to vector<16x1xi32>
      %117 = arith.cmpi eq, %3, %116 : vector<16x1xi32>
      %118 = arith.extui %117 : vector<16x1xi1> to vector<16x1xi32>
      %119 = arith.sitofp %118 : vector<16x1xi32> to vector<16x1xf32>
      %120 = arith.subf %115, %119 : vector<16x1xf32>
      %121 = vector.broadcast %120 : vector<16x1xf32> to vector<16x16xf32>
      %122 = vector.broadcast %107 : vector<1x16xf32> to vector<16x16xf32>
      %123 = arith.mulf %121, %122 : vector<16x16xf32>
      %124 = arith.subf %96, %123 : vector<16x16xf32>
      %c0_47 = arith.constant 0 : index
      %c0_48 = arith.constant 0 : index
      %125 = vector.load %arg6[%c0_47, %c0_48] : memref<16x16xf32, #tpu.memory_space<vmem>>, vector<16x16xf32>
      tpu.vector_store %arg6[%c0_47, %c0_48], %124 {strides = array<i32>} : memref<16x16xf32, #tpu.memory_space<vmem>>, vector<16x16xf32>,
      %c0_49 = arith.constant 0 : index
      %c0_50 = arith.constant 0 : index
      %126 = vector.load %arg7[%c0_49, %c0_50] : memref<16x8xf32, #tpu.memory_space<vmem>>, vector<16x8xf32>
      %127 = vector.broadcast %120 : vector<16x1xf32> to vector<16x8xf32>
      %128 = vector.broadcast %109 : vector<1x8xf32> to vector<16x8xf32>
      %129 = arith.mulf %127, %128 : vector<16x8xf32>
      %130 = arith.subf %126, %129 : vector<16x8xf32>
      %c0_51 = arith.constant 0 : index
      %c0_52 = arith.constant 0 : index
      %131 = vector.load %arg7[%c0_51, %c0_52] : memref<16x8xf32, #tpu.memory_space<vmem>>, vector<16x8xf32>
      tpu.vector_store %arg7[%c0_51, %c0_52], %130 {strides = array<i32>} : memref<16x8xf32, #tpu.memory_space<vmem>>, vector<16x8xf32>,
    }
    %c16_i32_30 = arith.constant 16 : i32
    %c0_31 = arith.constant 0 : index
    %c0_32 = arith.constant 0 : index
    %79 = vector.load %arg7[%c0_31, %c0_32] : memref<16x8xf32, #tpu.memory_space<vmem>>, vector<16x8xf32>
    %cst_33 = arith.constant dense<0xFF800000> : vector<16xf32>
    %80 = vector.multi_reduction <maximumf>, %79, %cst_33 [1] : vector<16x8xf32> to vector<16xf32>
    %81 = vector.shape_cast %80 : vector<16xf32> to vector<16x1xf32>
    %82 = vector.broadcast %81 : vector<16x1xf32> to vector<16x8xf32>
    %83 = arith.cmpf oeq, %79, %82 : vector<16x8xf32>
    %c8_i32 = arith.constant 8 : i32
    %84 = vector.shape_cast %5 : vector<1x8xi32> to vector<1x8xi32>
    %85 = vector.broadcast %84 : vector<1x8xi32> to vector<16x8xi32>
    %86 = vector.broadcast %c8_i32 : i32 to vector<16x8xi32>
    %87 = arith.select %83, %85, %86 : vector<16x8xi1>, vector<16x8xi32>
    %cst_34 = arith.constant dense<2147483647> : vector<16xi32>
    %88 = vector.multi_reduction <minsi>, %87, %cst_34 [1] : vector<16x8xi32> to vector<16xi32>
    %89 = vector.shape_cast %88 : vector<16xi32> to vector<16x1xi32>
    %c0_35 = arith.constant 0 : index
    %c0_36 = arith.constant 0 : index
    %90 = vector.load %arg3[%c0_35, %c0_36] : memref<16x1xi32, #tpu.memory_space<vmem>>, vector<16x1xi32>
    tpu.vector_store %arg3[%c0_35, %c0_36], %89 {strides = array<i32>} : memref<16x1xi32, #tpu.memory_space<vmem>>, vector<16x1xi32>,
    return
  }
  func.func @transform_0(%arg0: i32, %arg1: memref<2xi32, #tpu.memory_space<smem>>) -> (i32, i32) {
    %c0_i32 = arith.constant 0 : i32
    %c0_i32_0 = arith.constant 0 : i32
    %c0_i32_1 = arith.constant 0 : i32
    return %c0_i32, %c0_i32_0 : i32, i32
  }
  func.func @transform_1(%arg0: i32, %arg1: memref<2xi32, #tpu.memory_space<smem>>) -> (i32, i32) {
    %c0_i32 = arith.constant 0 : i32
    %c0_i32_0 = arith.constant 0 : i32
    %c0_i32_1 = arith.constant 0 : i32
    return %c0_i32, %c0_i32_0 : i32, i32
  }
  func.func @transform_2(%arg0: i32, %arg1: memref<2xi32, #tpu.memory_space<smem>>) -> (i32, i32) {
    %c0_i32 = arith.constant 0 : i32
    %c0_i32_0 = arith.constant 0 : i32
    %c0_i32_1 = arith.constant 0 : i32
    return %c0_i32, %c0_i32_0 : i32, i32
  }
}

</mosaic_0001>

<llo_original>
// kernel: tpu_custom_call.1
$region0: #{tpu_custom_call.1}
  #allocation0 [shape = 'u32[]', space=smem, size = 0x4, offset = 0x4, fixed_abs, tag = 'smem constant byte address 0x4 - core index']
  #allocation1 [shape = 'u32[144,128]{1,0:T(1,128)}', space=vmem, size = 0x12000, scoped, tag = 'internal scratch']
  #allocation2 [shape = 'f32[16,16]{1,0:T(8,128)}', space=vmem, size = 0x2000, scoped, tag = 'scratch operand']
  #allocation3 [shape = 'f32[16,16]{1,0:T(8,128)}', space=vmem, size = 0x2000, scoped, tag = 'scratch operand']
  #allocation4 [shape = 'f32[16,8]{1,0:T(8,128)}', space=vmem, size = 0x2000, scoped, tag = 'scratch operand']
  #allocation5 [shape = 'f32[16,16]{1,0:T(8,128)}', space=vmem, size = 0x2000, scoped, tag = 'scratch operand']
  #allocation6 [shape = 'f32[16,16]{1,0:T(8,128)}', space=vmem, size = 0x2000, scoped, tag = 'scratch operand']
  #allocation7 [shape = 'f32[16,8]{1,0:T(8,128)}', space=vmem, size = 0x2000, scoped, tag = 'scratch operand']
  #allocation8 [shape = 's32[1]{0}', space=sflag, size = 0x4, scoped, tag = 'scoped memory for tpu_custom_call.1']
  #allocation9 [shape = 'u8[512]{0}', space=smem, size = 0x200, scoped, tag = 'prefetched SMEM operand 0']
  %s0 = inlined_call_operand.hbm [shape: s32[2], index: 0, kind: input, shape index: {}]
  %s1 = inlined_call_operand.hbm [shape: f32[16,32], index: 1, kind: input, shape index: {}]
  %s2 = inlined_call_operand.vmem [shape: s32[16,1], index: 2, kind: output, shape index: {0}]
  %s3 = inlined_call_operand.hbm [shape: s32[1,8], index: 3, kind: output, shape index: {1}]
  %4 = xla_tuple %s2, %s3
  %s5 = sld [smem:[#allocation0]]
  $region40: #{tpu_custom_call.1} parent=0
    _
  %s7 = ssub.s32 1, %s5
  %s8 = scalar_select 0, %s7, %s5
  %10 = dma.hbm_to_smem %s0, 16, [#allocation9], [#allocation8]
  %11 = dma.done [#allocation8], 16
  %12 = sfence
  $region1: #{tpu_custom_call.1} parent=0
    #allocation10 [shape = 'u8[8192]{0}', space=vmem, size = 0x2000, scoped, tag = 'input window, operand 1, single buffered']
    #allocation11 [shape = 's32[1]{0}', space=sflag, size = 0x4, scoped, tag = 'scoped memory for tpu_custom_call.1']
    #allocation12 [shape = 's32[1]{0}', space=sflag, size = 0x4, scoped, tag = 'scoped memory for tpu_custom_call.1']
    #allocation13 [shape = 'u8[512]{0}', space=vmem, size = 0x400, scoped, tag = 'output window, operand 1, single buffered']
    %13 = vsyncpa [#allocation11], 0
    %14 = vsyncpa [#allocation12], 0
    // Predicated region
    $region2: #{tpu_custom_call.1} parent=1 // pred_check
      _
    $region3: #{tpu_custom_call.1} parent=1 // pred_check_branch
      %16 = sbr.rel (0) target = $region5
    $region4: #{tpu_custom_call.1} parent=1 // pred_region
      %s18 = ssub.s32 256, 256
      %19 = vsyncadd [#allocation11], %s18
      %s20 = sshll.u32 [#allocation10], 4
      %s21 = int_to_ptr.vmem [resolvable:$true] %s20
      %26 = dma.hbm_to_vmem [thread:$0]  %s1, 256, %s21, [#allocation11], 128, 128, 8
    $region5: #{tpu_custom_call.1} parent=1 // pred_fallthru
      _
    // Predicated region
    $region6: #{tpu_custom_call.1} parent=1 // pred_check
      _
    $region7: #{tpu_custom_call.1} parent=1 // pred_check_branch
      %28 = sbr.rel (0) target = $region9
    $region8: #{tpu_custom_call.1} parent=1 // pred_region
      %29 = dma.done [#allocation11], 256
    $region9: #{tpu_custom_call.1} parent=1 // pred_fallthru
      _
    %s30 = sld [smem:[#allocation9]]
    %s31 = sld [smem:[#allocation9 + $0x1]]
    %v32 = vld [vmem:[#allocation10] sm:$0xff]
    %v33 = vld [vmem:[#allocation10 + $0x8] sm:$0xff]
    %v34 = vlaneseq
    %v35 = vshrl.u32 %v34, 7
    %v36 = vadd.s32 %v35, 8
    %v37 = vlaneseq
    %v38 = vand.u32 %v37, 127
    %vm39 = vcmask 261120
    %v41 = vsel %vm39, %v32, 0
    %v44 = vsel %vm39, %v33, 0
    %46 = vmatprep.subr.mxu0 0.0
    %47 = vmatpush1.xpose.msra.mxu0 %v41
    %48 = vmatprep.subr.mxu0 0.0
    %49 = vmatpush1.xpose.msra.mxu0 %v44
    %50 = vmatprep.subr.mxu0 0.0
    %51 = vmatpush1.xpose.msra.mxu0 0.0
    %52 = vmatprep.subr.mxu0 0.0
    %53 = vmatpush1.xpose.msra.mxu0 0.0
    %54 = vmatprep.subr.mxu0 0.0
    %55 = vmatpush1.xpose.msra.mxu0 0.0
    %56 = vmatprep.subr.mxu0 0.0
    %57 = vmatpush1.xpose.msra.mxu0 0.0
    %58 = vmatprep.subr.mxu0 0.0
    %59 = vmatpush1.xpose.msra.mxu0 0.0
    %60 = vmatprep.subr.mxu0 0.0
    %61 = vmatpush1.xpose.msra.mxu0 0.0
    %62 = vmatprep.subr.mxu0 0.0
    %63 = vmatpush1.xpose.msra.mxu0 0.0
    %64 = vmatprep.subr.mxu0 0.0
    %65 = vmatpush1.xpose.msra.mxu0 0.0
    %66 = vmatprep.subr.mxu0 0.0
    %67 = vmatpush1.xpose.msra.mxu0 0.0
    %68 = vmatprep.subr.mxu0 0.0
    %69 = vmatpush1.xpose.msra.mxu0 0.0
    %70 = vmatprep.subr.mxu0 0.0
    %71 = vmatpush1.xpose.msra.mxu0 0.0
    %72 = vmatprep.subr.mxu0 0.0
    %73 = vmatpush1.xpose.msra.mxu0 0.0
    %74 = vmatprep.subr.mxu0 0.0
    %75 = vmatpush1.xpose.msra.mxu0 0.0
    %76 = vmatprep.subr.mxu0 0.0
    %77 = vmatpush1.xpose.msra.mxu0 0.0
    %78 = vmatprep.subr.mxu0 0.0
    %79 = vmatpush1.xpose.msra.mxu0 0.0
    %80 = vmatprep.subr.mxu0 0.0
    %81 = vmatpush1.xpose.msra.mxu0 0.0
    %82 = vmatprep.subr.mxu0 0.0
    %83 = vmatpush1.xpose.msra.mxu0 0.0
    %84 = vmatprep.subr.mxu0 0.0
    %85 = vmatpush1.xpose.msra.mxu0 0.0
    %86 = vmatprep.subr.mxu0 0.0
    %87 = vmatpush1.xpose.msra.mxu0 0.0
    %88 = vmatprep.subr.mxu0 0.0
    %89 = vmatpush1.xpose.msra.mxu0 0.0
    %90 = vmatprep.subr.mxu0 0.0
    %91 = vmatpush1.xpose.msra.mxu0 0.0
    %92 = vmatprep.subr.mxu0 0.0
    %93 = vmatpush1.xpose.msra.mxu0 0.0
    %94 = vmatprep.subr.mxu0 0.0
    %95 = vmatpush1.xpose.msra.mxu0 0.0
    %96 = vmatprep.subr.mxu0 0.0
    %97 = vmatpush1.xpose.msra.mxu0 0.0
    %98 = vmatprep.subr.mxu0 0.0
    %99 = vmatpush1.xpose.msra.mxu0 0.0
    %100 = vmatprep.subr.mxu0 0.0
    %101 = vmatpush1.xpose.msra.mxu0 0.0
    %102 = vmatprep.subr.mxu0 0.0
    %103 = vmatpush1.xpose.msra.mxu0 0.0
    %104 = vmatprep.subr.mxu0 0.0
    %105 = vmatpush1.xpose.msra.mxu0 0.0
    %106 = vmatprep.subr.mxu0 0.0
    %107 = vmatpush1.xpose.msra.mxu0 0.0
    %108 = vmatprep.subr.mxu0 0.0
    %109 = vmatpush1.xpose.msra.mxu0 0.0
    %110 = vmatprep.mubr.f32.mxu0 0.0
    %111 = vmatmul.mubr.f32.gmra.mrb[0].mxu0 %v41
    %v112 = vpop.f32.mrb[0].mxu0
    %v113 = vadd.f32 0.0, %v112
    %v114 = vpop.f32.mrb[0].mxu0
    %115 = vmatprep.mubr.f32.mxu0 0.0
    %116 = vmatmul.mubr.f32.gmra.mrb[0].mxu0 %v44
    %v117 = vpop.f32.mrb[0].mxu0
    %v118 = vadd.f32 0.0, %v117
    %v119 = vpop.f32.mrb[0].mxu0
    %120 = vdwg.mxu0
    %vm121 = vcmask 130048
    %122 = vst.msk [vmem:[#allocation2] sm:$0xff] %vm121, %v113
    %123 = vst.msk [vmem:[#allocation2 + $0x8] sm:$0xff] %vm121, %v118
    %v124 = vstv %s31
    %vm125 = vcmp.lt.s32.totalorder %v38, %v124
    %s126 = scalar_lea.vmem [#allocation2], %s30
    %v127 = vld [vmem:[%s126] sm:$0x1]
    %v128 = vsel %vm125, %v127, inf
    %vm129 = vcmask 122880
    %v130 = vsel %vm129, %v128, inf
    %131 = vmin.xlane.f32.xlu0 %v130
    %v132 = vpop.xlane.xlu0 %131
    %v133 = vrot.slane %v132, 4
    %v134 = vmin.f32 %v132, %v133
    %v135 = vrot.slane %v134, 2
    %v136 = vmin.f32 %v134, %v135
    %v137 = vrot.slane %v136, 1
    %v138 = vmin.f32 %v136, %v137
    %s139 = vtos %v138
    %v140 = vstv %s139
    %vm141 = vcmp.eq.f32.partialorder %v128, %v140
    %v142 = vsel %vm141, %v38, 16
    %v143 = vsel %vm129, %v142, 2147483647
    %v144 = vand.u32 %v143, 65535
    %v145 = vshra.s32 %v143, 16
    %v146 = vcvt.s32.f32 %v144
    %v147 = vcvt.s32.f32 %v145
    %148 = vmin.xlane.f32.xlu0 %v147
    %v149 = vpop.xlane.xlu0 %148
    %vm150 = vcmp.eq.f32.partialorder %v147, %v149
    %v151 = vsel %vm150, %v146, inf
    %152 = vmin.xlane.f32.xlu0 %v151
    %v153 = vpop.xlane.xlu0 %152
    %v154 = vcvt.f32.s32 %v153
    %v155 = vcvt.f32.s32 %v149
    %v156 = vshll.u32 %v155, 16
    %v157 = vadd.s32 %v156, %v154
    %v158 = vrot.slane %v157, 4
    %vm159 = vcmp.lt.s32.totalorder %v157, %v158
    %v160 = vsel %vm159, %v157, %v158
    %v161 = vrot.slane %v160, 2
    %vm162 = vcmp.lt.s32.totalorder %v160, %v161
    %v163 = vsel %vm162, %v160, %v161
    %v164 = vrot.slane %v163, 1
    %vm165 = vcmp.lt.s32.totalorder %v163, %v164
    %v166 = vsel %vm165, %v163, %v164
    %s167 = vtos %v166
    %vm168 = vcmp.eq.s32.totalorder %v38, 0
    %v169 = vstv %s167
    %v170 = vsel %vm168, %v169, 0
    loop: start=1, step=1, limit=8
    $region10: #{tpu_custom_call.1} parent=1 // loop_pre_header
      _
    $region11: #{tpu_custom_call.1} parent=1 // loop_header
      %s172 = sphi 1, %s176
      %p173 = scmp.ge.s32.totalorder %s172, 8
      %v177 = vphi %v128, %v200
      %s178 = sphi %s167, %s238
      %v179 = vphi %v170, %v242
    $region12: #{tpu_custom_call.1} parent=1 // loop_header_branch
      %175 = sbr.rel (%p173) target = $region16
    $region13: #{tpu_custom_call.1} parent=1 // loop_body
      %v180 = vstv %s178
      %vm181 = vcmp.eq.s32.totalorder %v35, %v180
      %vm182 = vcmp.eq.s32.totalorder %v36, %v180
      %v183 = vld [vmem:[#allocation2] sm:$0xff]
      %v184 = vld [vmem:[#allocation2 + $0x8] sm:$0xff]
      %v185 = vsel %vm181, 1, 0
      %v186 = vsel %vm182, 1, 0
      %vm187 = vcmp.eq.s32.totalorder %v185, 1
      %vm188 = vcmp.eq.s32.totalorder %v186, 1
      %v189 = vsel %vm187, %v183, 0.0
      %v190 = vsel %vm188, %v184, 0.0
      %v191 = vsel %vm121, %v189, 0.0
      %v192 = vsel %vm121, %v190, 0.0
      %v193 = vadd.f32 %v191, %v192
      %v194 = vrot.slane %v193, 4
      %v195 = vadd.f32 %v193, %v194
      %v196 = vrot.slane %v195, 2
      %v197 = vadd.f32 %v195, %v196
      %v198 = vrot.slane %v197, 1
      %v199 = vadd.f32 %v197, %v198
      %v200 = vmax.f32 %v177, %v199
      %v201 = vsel %vm129, %v200, inf
      %202 = vmin.xlane.f32.xlu0 %v201
      %v203 = vpop.xlane.xlu0 %202
      %v204 = vrot.slane %v203, 4
      %v205 = vmin.f32 %v203, %v204
      %v206 = vrot.slane %v205, 2
      %v207 = vmin.f32 %v205, %v206
      %v208 = vrot.slane %v207, 1
      %v209 = vmin.f32 %v207, %v208
      %s210 = vtos %v209
      %v211 = vstv %s210
      %vm212 = vcmp.eq.f32.partialorder %v200, %v211
      %v213 = vsel %vm212, %v38, 16
      %v214 = vsel %vm129, %v213, 2147483647
      %v215 = vand.u32 %v214, 65535
      %v216 = vshra.s32 %v214, 16
      %v217 = vcvt.s32.f32 %v215
      %v218 = vcvt.s32.f32 %v216
      %219 = vmin.xlane.f32.xlu0 %v218
      %v220 = vpop.xlane.xlu0 %219
      %vm221 = vcmp.eq.f32.partialorder %v218, %v220
      %v222 = vsel %vm221, %v217, inf
      %223 = vmin.xlane.f32.xlu0 %v222
      %v224 = vpop.xlane.xlu0 %223
      %v225 = vcvt.f32.s32 %v224
      %v226 = vcvt.f32.s32 %v220
      %v227 = vshll.u32 %v226, 16
      %v228 = vadd.s32 %v227, %v225
      %v229 = vrot.slane %v228, 4
      %vm230 = vcmp.lt.s32.totalorder %v228, %v229
      %v231 = vsel %vm230, %v228, %v229
      %v232 = vrot.slane %v231, 2
      %vm233 = vcmp.lt.s32.totalorder %v231, %v232
      %v234 = vsel %vm233, %v231, %v232
      %v235 = vrot.slane %v234, 1
      %vm236 = vcmp.lt.s32.totalorder %v234, %v235
      %v237 = vsel %vm236, %v234, %v235
      %s238 = vtos %v237
      %v239 = vstv %s172
      %vm240 = vcmp.eq.s32.totalorder %v38, %v239
      %v241 = vstv %s238
      %v242 = vsel %vm240, %v241, %v179
    $region14: #{tpu_custom_call.1} parent=1 // loop_footer
      %s176 = sadd.s32 1, %s172
    $region15: #{tpu_custom_call.1} parent=1 // loop_footer_branch
      %171 = sbr.rel target = $region11
    $region16: #{tpu_custom_call.1} parent=1 // loop_exit
      _
    %vm243 = vcmask 57344
    %244 = vst.msk [vmem:[#allocation13] sm:$0x1] %vm243, %v179
    %vm245 = vcmp.eq.s32.totalorder %v35, %v179
    %vm246 = vcmp.eq.s32.totalorder %v36, %v179
    %v247 = vsel %vm245, 1, 0
    %v248 = vsel %vm246, 1, 0
    %v249 = vcvt.s32.f32 %v247
    %v250 = vcvt.s32.f32 %v248
    %vm251 = vcmask 64512
    %252 = vst.msk [vmem:[#allocation4] sm:$0xff] %vm251, %v249
    %253 = vst.msk [vmem:[#allocation4 + $0x8] sm:$0xff] %vm251, %v250
    %v254 = vld [vmem:[#allocation2] sm:$0xff]
    %v255 = vld [vmem:[#allocation2 + $0x8] sm:$0xff]
    %vm256 = vcmp.eq.s32.totalorder %v35, %v38
    %vm257 = vcmp.eq.s32.totalorder %v36, %v38
    %vm258 = vcmp.lt.s32.totalorder %v35, %v124
    %vm259 = vcmp.lt.s32.totalorder %v36, %v124
    %vm260 = vmand %vm258, %vm125
    %vm261 = vmand %vm259, %vm125
    %vm262 = vmxor %vm256, 1
    %vm263 = vmxor %vm257, 1
    %vm264 = vmand %vm260, %vm262
    %vm265 = vmand %vm261, %vm263
    %v266 = vmul.f32 %v254, 1.442695
    %v267 = vpow.pop %v266
    %v268 = vmul.f32 %v255, 1.442695
    %v269 = vpow.pop %v268
    %v270 = vsel %vm264, %v267, 0.0
    %v271 = vsel %vm265, %v269, 0.0
    %v272 = vsel %vm121, %v270, 0.0
    %273 = vadd.xlane.f32.xlu0 %v272
    %v274 = vpop.xlane.xlu0 %273
    %v275 = vsel %vm121, %v271, 0.0
    %276 = vadd.xlane.f32.xlu0 %v275
    %v277 = vpop.xlane.xlu0 %276
    %v278 = vadd.f32 %v274, 2.220446e-16
    %v279 = vadd.f32 %v277, 2.220446e-16
    %v280 = vrsqrt.pop %v278
    %v281 = vrsqrt.pop %v279
    %v282 = vadd.f32 %v272, %v275
    %v283 = vrot.slane %v282, 4
    %v284 = vadd.f32 %v282, %v283
    %v285 = vrot.slane %v284, 2
    %v286 = vadd.f32 %v284, %v285
    %v287 = vrot.slane %v286, 1
    %v288 = vadd.f32 %v286, %v287
    %v289 = vadd.f32 %v288, 2.220446e-16
    %v290 = vrsqrt.pop %v289
    %v291 = vsel %vm256, 1, 0
    %v292 = vsel %vm257, 1, 0
    %v293 = vcvt.s32.f32 %v291
    %v294 = vcvt.s32.f32 %v292
    %v295 = vmul.f32 %v280, %v270
    %v296 = vmul.f32 %v281, %v271
    %v297 = vmul.f32 %v295, %v290
    %v298 = vmul.f32 %v296, %v290
    %v299 = vmul.f32 %v297, 0.99
    %v300 = vmul.f32 %v298, 0.99
    %v301 = vsub.f32 %v293, %v299
    %v302 = vsub.f32 %v294, %v300
    %v303 = vadd.f32 %v301, 2.220446e-16
    %v304 = vadd.f32 %v302, 2.220446e-16
    %v305 = vsel %vm260, %v303, %v293
    %v306 = vsel %vm261, %v304, %v294
    %307 = vst.msk [vmem:[#allocation3] sm:$0xff] %vm121, %v305
    %308 = vst.msk [vmem:[#allocation3 + $0x8] sm:$0xff] %vm121, %v306
    loop: start=0, step=1, limit=16
    $region17: #{tpu_custom_call.1} parent=1 // loop_pre_header
      _
    $region18: #{tpu_custom_call.1} parent=1 // loop_header
      %s310 = sphi 0, %s314
      %p311 = scmp.ge.s32.totalorder %s310, 16
    $region19: #{tpu_custom_call.1} parent=1 // loop_header_branch
      %313 = sbr.rel (%p311) target = $region23
    $region20: #{tpu_custom_call.1} parent=1 // loop_body
      %s315 = scalar_lea.vmem [#allocation3], %s310
      %v316 = vld [vmem:[%s315] sm:$0x1]
      %s317 = scalar_lea.vmem [#allocation4], %s310
      %v318 = vld [vmem:[%s317] sm:$0x1]
      %v319 = vld [vmem:[#allocation3] sm:$0xff]
      %v320 = vld [vmem:[#allocation3 + $0x8] sm:$0xff]
      %v321 = vstv %s310
      %vm322 = vcmp.eq.s32.totalorder %v38, %v321
      %v323 = vsel %vm322, %v316, 0.0
      %v324 = vsel %vm129, %v323, 0.0
      %325 = vadd.xlane.f32.xlu0 %v324
      %v326 = vpop.xlane.xlu0 %325
      %v327 = vrot.slane %v326, 4
      %v328 = vadd.f32 %v326, %v327
      %v329 = vrot.slane %v328, 2
      %v330 = vadd.f32 %v328, %v329
      %v331 = vrot.slane %v330, 1
      %v332 = vadd.f32 %v330, %v331
      %s333 = vtos %v332
      %v334 = vstv %s333
      %v335 = vrcp.pop %v334
      %s336 = vtos %v335
      %v337 = vstv %s336
      %v338 = vmul.f32 %v316, %v337
      %v339 = vmul.f32 %v318, %v337
      %v340 = vsel %vm322, 1, 0
      %vm341 = vcmp.eq.s32.totalorder %v340, 1
      %v342 = vsel %vm341, %v319, 0.0
      %v343 = vsel %vm341, %v320, 0.0
      %v344 = vsel %vm121, %v342, 0.0
      %345 = vadd.xlane.f32.xlu0 %v344
      %v346 = vpop.xlane.xlu0 %345
      %v347 = vsel %vm121, %v343, 0.0
      %348 = vadd.xlane.f32.xlu0 %v347
      %v349 = vpop.xlane.xlu0 %348
      %vm350 = vcmp.eq.s32.totalorder %v35, %v321
      %vm351 = vcmp.eq.s32.totalorder %v36, %v321
      %v352 = vsel %vm350, 1, 0
      %v353 = vsel %vm351, 1, 0
      %v354 = vcvt.s32.f32 %v352
      %v355 = vcvt.s32.f32 %v353
      %v356 = vsub.f32 %v346, %v354
      %v357 = vsub.f32 %v349, %v355
      %v358 = vlaneseq
      %v359 = vshrl.u32 %v358, 7
      %v360 = vsub.s32 0, %v359
      %v361 = vrot.slane %v338, %v360
      %v362 = vmul.f32 %v356, %v361
      %v363 = vmul.f32 %v357, %v361
      %v364 = vsub.f32 %v319, %v362
      %v365 = vsub.f32 %v320, %v363
      %366 = vst.msk [vmem:[#allocation3] sm:$0xff] %vm121, %v364
      %367 = vst.msk [vmem:[#allocation3 + $0x8] sm:$0xff] %vm121, %v365
      %v368 = vld [vmem:[#allocation4] sm:$0xff]
      %v369 = vld [vmem:[#allocation4 + $0x8] sm:$0xff]
      %v370 = vlaneseq
      %v371 = vshrl.u32 %v370, 7
      %v372 = vsub.s32 0, %v371
      %v373 = vrot.slane %v339, %v372
      %v374 = vmul.f32 %v356, %v373
      %v375 = vmul.f32 %v357, %v373
      %v376 = vsub.f32 %v368, %v374
      %v377 = vsub.f32 %v369, %v375
      %378 = vst.msk [vmem:[#allocation4] sm:$0xff] %vm251, %v376
      %379 = vst.msk [vmem:[#allocation4 + $0x8] sm:$0xff] %vm251, %v377
    $region21: #{tpu_custom_call.1} parent=1 // loop_footer
      %s314 = sadd.s32 1, %s310
    $region22: #{tpu_custom_call.1} parent=1 // loop_footer_branch
      %309 = sbr.rel target = $region18
    $region23: #{tpu_custom_call.1} parent=1 // loop_exit
      _
    %v380 = vld [vmem:[#allocation4] sm:$0xff]
    %v381 = vld [vmem:[#allocation4 + $0x8] sm:$0xff]
    %v382 = vsel %vm251, %v380, -inf
    %383 = vmax.xlane.f32.xlu0 %v382
    %v384 = vpop.xlane.xlu0 %383
    %v385 = vsel %vm251, %v381, -inf
    %386 = vmax.xlane.f32.xlu0 %v385
    %v387 = vpop.xlane.xlu0 %386
    %vm388 = vcmp.eq.f32.partialorder %v380, %v384
    %vm389 = vcmp.eq.f32.partialorder %v381, %v387
    %v390 = vsel %vm388, %v38, 8
    %v391 = vsel %vm389, %v38, 8
    %v392 = vsel %vm251, %v390, 2147483647
    %v393 = vand.u32 %v392, 65535
    %v394 = vshra.s32 %v392, 16
    %v395 = vcvt.s32.f32 %v393
    %v396 = vcvt.s32.f32 %v394
    %397 = vmin.xlane.f32.xlu0 %v396
    %v398 = vpop.xlane.xlu0 %397
    %vm399 = vcmp.eq.f32.partialorder %v396, %v398
    %v400 = vsel %vm399, %v395, inf
    %401 = vmin.xlane.f32.xlu0 %v400
    %v402 = vpop.xlane.xlu0 %401
    %v403 = vcvt.f32.s32 %v402
    %v404 = vcvt.f32.s32 %v398
    %v405 = vshll.u32 %v404, 16
    %v406 = vadd.s32 %v405, %v403
    %v407 = vsel %vm251, %v391, 2147483647
    %v408 = vand.u32 %v407, 65535
    %v409 = vshra.s32 %v407, 16
    %v410 = vcvt.s32.f32 %v408
    %v411 = vcvt.s32.f32 %v409
    %412 = vmin.xlane.f32.xlu0 %v411
    %v413 = vpop.xlane.xlu0 %412
    %vm414 = vcmp.eq.f32.partialorder %v411, %v413
    %v415 = vsel %vm414, %v410, inf
    %416 = vmin.xlane.f32.xlu0 %v415
    %v417 = vpop.xlane.xlu0 %416
    %v418 = vcvt.f32.s32 %v417
    %v419 = vcvt.f32.s32 %v413
    %v420 = vshll.u32 %v419, 16
    %v421 = vadd.s32 %v420, %v418
    %vm422 = vcmask 7168
    %423 = vst.msk [vmem:[%s2] sm:$0xff] %vm422, %v406
    %424 = vst.msk [vmem:[%s2 + $0x8] sm:$0xff] %vm422, %v421
    // Predicated region
    $region24: #{tpu_custom_call.1} parent=1 // pred_check
      _
    $region25: #{tpu_custom_call.1} parent=1 // pred_check_branch
      %426 = sbr.rel (0) target = $region27
    $region26: #{tpu_custom_call.1} parent=1 // pred_region
      _
    $region27: #{tpu_custom_call.1} parent=1 // pred_fallthru
      _
    // Predicated region
    $region28: #{tpu_custom_call.1} parent=1 // pred_check
      _
    $region29: #{tpu_custom_call.1} parent=1 // pred_check_branch
      %428 = sbr.rel (0) target = $region31
    $region30: #{tpu_custom_call.1} parent=1 // pred_region
      %s430 = ssub.s32 16, 16
      %431 = vsyncadd [#allocation12], %s430
      %s433 = sshll.u32 [#allocation13], 4
      %s434 = int_to_ptr.vmem [resolvable:$true] %s433
      %436 = dma.vmem_to_hbm [thread:$0]  %s434, 16, %s3, [#allocation12]
    $region31: #{tpu_custom_call.1} parent=1 // pred_fallthru
      _
    // Predicated region
    $region32: #{tpu_custom_call.1} parent=1 // pred_check
      _
    $region33: #{tpu_custom_call.1} parent=1 // pred_check_branch
      %438 = sbr.rel (0) target = $region35
    $region34: #{tpu_custom_call.1} parent=1 // pred_region
      _
    $region35: #{tpu_custom_call.1} parent=1 // pred_fallthru
      _
    // Predicated region
    $region36: #{tpu_custom_call.1} parent=1 // pred_check
      _
    $region37: #{tpu_custom_call.1} parent=1 // pred_check_branch
      %440 = sbr.rel (0) target = $region39
    $region38: #{tpu_custom_call.1} parent=1 // pred_region
      %441 = dma.done [#allocation12], 16
    $region39: #{tpu_custom_call.1} parent=1 // pred_fallthru
      _
    %442 = vsyncpa [#allocation11], 1
    %443 = vsyncpa [#allocation12], 1

</llo_original>
